<compile_context>
chip_gen: v7x
topology: tpu7x:2x2x1
jax: 0.10.0
libtpu: 0.0.40
codegen_flags: <defaults>
</compile_context>

<pallas_src>
import functools
import math

import jax
import jax.numpy as jnp
from jax.experimental import pallas as pl
from jax.experimental.pallas import tpu as pltpu


def _round_up(x, m):
    return ((x + m - 1) // m) * m


def _cdiv(a, b):
    return (a + b - 1) // b


# VMEM budget used for tile selection + scoped limit.  48 MiB is safe on v7x
# (64 MiB physical) and well within v5e/v6e (128 MiB).
_VMEM_LIMIT_BYTES = 48 * 1024 * 1024
_VMEM_TILE_BUDGET = 40 * 1024 * 1024

# Below this many MACs the pallas_call is pure launch overhead -> plain XLA.
_PALLAS_MIN_MACS = 1 << 21


# ----------------------------------------------------------------------------
# Pallas kernel: one (bm, tn) output tile, reduced over the (innermost) K axis.
# The output block itself is the accumulator: its index_map ignores k, so the
# block stays resident in VMEM across the whole K axis.
# ----------------------------------------------------------------------------
def set_layer_kernel(x_ref, w_ref, b_ref, o_ref):
    # x_ref : (bm, tk)  bf16
    # w_ref : (tk, tn)  bf16
    # b_ref : (1, tn)   f32
    # o_ref : (bm, tn)  f32   (accumulator, resident across k)
    @pl.when(pl.program_id(2) == 0)
    def _():
        o_ref[...] = jnp.zeros_like(o_ref) + b_ref[...]

    o_ref[...] += jnp.dot(
        x_ref[...], w_ref[...], preferred_element_type=jnp.float32
    )


# ----------------------------------------------------------------------------
# One-time weight preparation: densify the sparse weights, cast to bf16, pad
# to the chosen tile grid, pick tile sizes from the VMEM budget.
# ----------------------------------------------------------------------------
def prepare_set_layer_weights(w_dense, bias, *, bm_max=256, tn_max=512, tk_max=4096):
    indim, outdim = w_dense.shape

    # --- N tiling: lane-dense, and >= 2 blocks when possible so both v7x
    #     TensorCores get work even with a single M block.
    np0 = _round_up(outdim, 128)
    min_n_blocks = 2 if np0 >= 256 else 1
    n_blocks_n = max(min_n_blocks, _cdiv(np0, tn_max))
    tn = _round_up(_cdiv(np0, n_blocks_n), 128)
    Np = tn * n_blocks_n

    # --- K tiling: as large as the VMEM budget allows (double-buffered bf16
    #     x and w tiles + f32 output tile + bias), capped at tk_max.
    kp0 = _round_up(indim, 128)
    fixed_bytes = 2 * bm_max * tn * 4 + 2 * tn * 4            # out + bias
    remaining = max(_VMEM_TILE_BUDGET - fixed_bytes, 4 * 128 * (bm_max + tn))
    tk_cap = remaining // (2 * 2 * (bm_max + tn))              # 2 bufs * 2 B
    tk_cap = max(128, (tk_cap // 128) * 128)
    tk_cap = min(tk_cap, tk_max)
    n_blocks_k = _cdiv(kp0, tk_cap)
    tk = _round_up(_cdiv(kp0, n_blocks_k), 128)
    Kp = tk * n_blocks_k

    # Pre-padded, pre-cast operands (done once, reused by every forward call).
    w_pad = jnp.pad(
        w_dense.astype(jnp.bfloat16), ((0, Kp - indim), (0, Np - outdim))
    )
    bias_pad = jnp.pad(
        bias.astype(jnp.float32).reshape(1, outdim), ((0, 0), (0, Np - outdim))
    )

    return {
        "w_pad": w_pad,
        "bias_pad": bias_pad,
        "indim": indim,
        "outdim": outdim,
        "Kp": Kp,
        "Np": Np,
        "tn": tn,
        "tk": tk,
        "bm_max": bm_max,
    }


# ----------------------------------------------------------------------------
# Pallas forward (jitted; tile sizes are static)
# ----------------------------------------------------------------------------
@functools.partial(
    jax.jit,
    static_argnames=("B", "indim", "outdim", "Bp", "Kp", "Np", "bm", "tn", "tk"),
)
def _set_layer_pallas(x, w_pad, bias_pad, *, B, indim, outdim, Bp, Kp, Np, bm, tn, tk):
    # Only the activation is padded/cast per call (it changes every call and
    # is small compared to the weight stream).
    x_bf = jnp.pad(x.astype(jnp.bfloat16), ((0, Bp - B), (0, Kp - indim)))

    grid = (Bp // bm, Np // tn, Kp // tk)

    cost = pl.CostEstimate(
        flops=2 * Bp * Kp * Np,
        transcendentals=0,
        bytes_accessed=Bp * Kp * 2 + Kp * Np * 2 + Np * 4 + Bp * Np * 4,
    )

    out_padded = pl.pallas_call(
        set_layer_kernel,
        out_shape=jax.ShapeDtypeStruct((Bp, Np), jnp.float32),
        grid_spec=pltpu.PrefetchScalarGridSpec(
            num_scalar_prefetch=0,
            grid=grid,
            in_specs=[
                pl.BlockSpec((bm, tk), lambda i, j, k: (i, k)),   # x tile
                pl.BlockSpec((tk, tn), lambda i, j, k: (k, j)),   # weight tile
                pl.BlockSpec((1, tn), lambda i, j, k: (0, j)),    # bias tile
            ],
            out_specs=pl.BlockSpec((bm, tn), lambda i, j, k: (i, j)),
        ),
        compiler_params=pltpu.CompilerParams(
            dimension_semantics=("parallel", "parallel", "arbitrary"),
            vmem_limit_bytes=_VMEM_LIMIT_BYTES,
        ),
        cost_estimate=cost,
    )(x_bf, w_pad, bias_pad)

    return out_padded[:B, :outdim]


def set_layer_forward(x, params):
    """y = x @ W_sparse + bias for a SETLayer, via the Pallas TPU kernel."""
    B = x.shape[0]
    indim = params["indim"]
    outdim = params["outdim"]

    # Small-problem fallback: at toy sizes the pallas_call is pure overhead.
    if B * indim * outdim < _PALLAS_MIN_MACS:
        return x.astype(jnp.float32) @ params["w_dense"] + params["bias"]

    # Choose bm to minimise batch padding (never round Bp to a full bm_max).
    bm_max = params["bm_max"]
    b8 = _round_up(B, 8)
    n_blocks_m = _cdiv(b8, bm_max)
    bm = _round_up(_cdiv(b8, n_blocks_m), 8)
    Bp = bm * n_blocks_m

    return _set_layer_pallas(
        x, params["w_pad"], params["bias_pad"],
        B=B, indim=indim, outdim=outdim,
        Bp=Bp, Kp=params["Kp"], Np=params["Np"],
        bm=bm, tn=params["tn"], tk=params["tk"],
    )


# ----------------------------------------------------------------------------
# Deterministic SETLayer parameter construction (mirrors module __init__)
# ----------------------------------------------------------------------------
def build_set_layer_params(key, in_features, out_features, epsilon=11, sparsity=None):
    if sparsity is None:
        density = epsilon * (in_features + out_features) / (in_features * out_features)
        sparsity = 1.0 - density
        if sparsity > 1:
            sparsity = 0.9
    n_params = int(in_features * out_features * (1.0 - sparsity))

    k_conn, k_w, k_b = jax.random.split(key, 3)

    # Unique random connections: take the first n_params of a permutation of
    # all (in, out) pairs (module uses rejection sampling; uniqueness is the
    # invariant that matters).
    flat = jax.random.permutation(k_conn, in_features * out_features)[:n_params]
    inds = (flat // out_features).astype(jnp.int32)
    inds_out = (flat % out_features).astype(jnp.int32)

    stdv = math.sqrt(2.0 / in_features)
    weight = jax.random.normal(k_w, (n_params,), dtype=jnp.float32) * stdv
    bias = jax.random.normal(k_b, (out_features,), dtype=jnp.float32) * stdv

    # Densify the sparse weight vector (unique pairs -> .add == scatter_add).
    w_dense = jnp.zeros((in_features, out_features), dtype=jnp.float32)
    w_dense = w_dense.at[inds, inds_out].add(weight)

    params = {
        "inds": inds,
        "inds_out": inds_out,
        "weight": weight,
        "bias": bias,
        "w_dense": w_dense,
        "n_params": n_params,
    }
    # One-time kernel-side preparation (bf16 cast + tile padding + tiling).
    params.update(prepare_set_layer_weights(w_dense, bias))
    return params


def set_layer_reference(x, params):
    """Pure-JAX reference replicating the PyTorch forward literally."""
    k = x[:, params["inds"]]                      # gather
    k = k * params["weight"]                      # per-connection scale
    z = jnp.zeros((x.shape[0], params["bias"].shape[0]), dtype=x.dtype)
    z = z.at[:, params["inds_out"]].add(k)        # scatter_add over last dim
    return z + params["bias"]


if __name__ == "__main__":
    key = jax.random.PRNGKey(0)
    k_small, k_big, k_x1, k_x2 = jax.random.split(key, 4)

    # --- Case 1: tiny (module-example scale) -> exercises the XLA fallback.
    p_small = build_set_layer_params(k_small, 32, 32, epsilon=11)
    x_small = jax.random.normal(k_x1, (8, 32), dtype=jnp.float32)
    y_small = jax.block_until_ready(set_layer_forward(x_small, p_small))
    y_small_ref = set_layer_reference(x_small, p_small)
    assert y_small.shape == (8, 32)
    assert jnp.allclose(y_small, y_small_ref, atol=1e-5, rtol=1e-5), \
        "fallback path mismatch vs reference"

    # --- Case 2: moderate dims -> exercises the Pallas kernel path.
    in_features, out_features, batch = 1024, 512, 64
    p_big = build_set_layer_params(k_big, in_features, out_features, epsilon=11)
    x_big = jax.random.normal(k_x2, (batch, in_features), dtype=jnp.float32)
    y_big = jax.block_until_ready(set_layer_forward(x_big, p_big))
    y_big_ref = set_layer_reference(x_big, p_big)
    assert y_big.shape == (batch, out_features)
    # bf16 operands / f32 accumulation; sparse columns (~30 terms each) keep
    # the error far below this tolerance.
    assert jnp.allclose(y_big, y_big_ref, atol=2e-2, rtol=2e-2), \
        "pallas path mismatch vs reference"

    print("KERNEL_OK")
</pallas_src>

<mosaic_0001>
module attributes {stable_mosaic.version = 11 : i64} {
  func.func @set_layer_kernel(%arg0: i32, %arg1: i32, %arg2: i32, %arg3: memref<64x1024xbf16, #tpu.memory_space<vmem>>, %arg4: memref<1024x256xbf16, #tpu.memory_space<vmem>>, %arg5: memref<1x256xf32, #tpu.memory_space<vmem>>, %arg6: memref<64x256xf32, #tpu.memory_space<vmem>>) attributes {dimension_semantics = [#tpu.dimension_semantics<parallel>, #tpu.dimension_semantics<parallel>, #tpu.dimension_semantics<arbitrary>], iteration_bounds = array<i64: 1, 2, 1>, scalar_prefetch = 0 : i64, scratch_operands = 0 : i64, tpu.core_type = #tpu.core_type<tc>, window_params = [{transform_indices = @transform_0, window_bounds = array<i64: 64, 1024>}, {transform_indices = @transform_1, window_bounds = array<i64: 1024, 256>}, {transform_indices = @transform_2, window_bounds = array<i64: 1, 256>}, {transform_indices = @transform_3, window_bounds = array<i64: 64, 256>}]} {
    %c0_i32 = arith.constant 0 : i32
    %0 = arith.cmpi eq, %arg2, %c0_i32 : i32
    %1 = arith.extui %0 : i1 to i32
    %c0_i32_0 = arith.constant 0 : i32
    %2 = arith.cmpi ne, %1, %c0_i32_0 : i32
    scf.if %2 {
      %cst_8 = arith.constant 0.000000e+00 : f32
      %9 = vector.broadcast %cst_8 : f32 to vector<64x256xf32>
      %c0_9 = arith.constant 0 : index
      %c0_10 = arith.constant 0 : index
      %10 = vector.load %arg5[%c0_9, %c0_10] : memref<1x256xf32, #tpu.memory_space<vmem>>, vector<1x256xf32>
      %11 = vector.broadcast %10 : vector<1x256xf32> to vector<64x256xf32>
      %12 = arith.addf %9, %11 : vector<64x256xf32>
      %c0_11 = arith.constant 0 : index
      %c0_12 = arith.constant 0 : index
      %13 = vector.load %arg6[%c0_11, %c0_12] : memref<64x256xf32, #tpu.memory_space<vmem>>, vector<64x256xf32>
      tpu.vector_store %arg6[%c0_11, %c0_12], %12 {strides = array<i32>} : memref<64x256xf32, #tpu.memory_space<vmem>>, vector<64x256xf32>,
    } else {
    }
    %c0 = arith.constant 0 : index
    %c0_1 = arith.constant 0 : index
    %3 = vector.load %arg6[%c0, %c0_1] : memref<64x256xf32, #tpu.memory_space<vmem>>, vector<64x256xf32>
    %c0_2 = arith.constant 0 : index
    %c0_3 = arith.constant 0 : index
    %4 = vector.load %arg3[%c0_2, %c0_3] : memref<64x1024xbf16, #tpu.memory_space<vmem>>, vector<64x1024xbf16>
    %c0_4 = arith.constant 0 : index
    %c0_5 = arith.constant 0 : index
    %5 = vector.load %arg4[%c0_4, %c0_5] : memref<1024x256xbf16, #tpu.memory_space<vmem>>, vector<1024x256xbf16>
    %cst = arith.constant dense<0.000000e+00> : vector<64x256xf32>
    %6 = tpu.matmul %4, %5, %cst {dimension_numbers = #tpu.dot_dimension_numbers<[1], [0], [0], [1], [0, 0, 1, 1], [], []>} : vector<64x1024xbf16>, vector<1024x256xbf16>, vector<64x256xf32> -> vector<64x256xf32>
    %7 = arith.addf %3, %6 : vector<64x256xf32>
    %c0_6 = arith.constant 0 : index
    %c0_7 = arith.constant 0 : index
    %8 = vector.load %arg6[%c0_6, %c0_7] : memref<64x256xf32, #tpu.memory_space<vmem>>, vector<64x256xf32>
    tpu.vector_store %arg6[%c0_6, %c0_7], %7 {strides = array<i32>} : memref<64x256xf32, #tpu.memory_space<vmem>>, vector<64x256xf32>,
    return
  }
  func.func @transform_0(%arg0: i32, %arg1: i32, %arg2: i32) -> (i32, i32) {
    %c0_i32 = arith.constant 0 : i32
    return %arg0, %arg2 : i32, i32
  }
  func.func @transform_1(%arg0: i32, %arg1: i32, %arg2: i32) -> (i32, i32) {
    %c0_i32 = arith.constant 0 : i32
    return %arg2, %arg1 : i32, i32
  }
  func.func @transform_2(%arg0: i32, %arg1: i32, %arg2: i32) -> (i32, i32) {
    %c0_i32 = arith.constant 0 : i32
    %c0_i32_0 = arith.constant 0 : i32
    return %c0_i32, %arg1 : i32, i32
  }
  func.func @transform_3(%arg0: i32, %arg1: i32, %arg2: i32) -> (i32, i32) {
    %c0_i32 = arith.constant 0 : i32
    return %arg0, %arg1 : i32, i32
  }
}

</mosaic_0001>

<llo_original>
// kernel: _set_layer_pallas.1
$region0: #{_set_layer_pallas.1}
  #allocation0 [shape = 'u32[]', space=smem, size = 0x4, offset = 0x4, fixed_abs, tag = 'smem constant byte address 0x4 - core index']
  #allocation1 [shape = 'u32[144,128]{1,0:T(1,128)}', space=vmem, size = 0x12000, scoped, tag = 'internal scratch']
  %s0 = inlined_call_operand.vmem [shape: bf16[64,1024], index: 0, kind: input, shape index: {}]
  %s1 = inlined_call_operand.hbm [shape: bf16[1024,512], index: 1, kind: input, shape index: {}]
  %s2 = inlined_call_operand.vmem [shape: f32[1,512], index: 2, kind: input, shape index: {}]
  %s3 = inlined_call_operand.hbm [shape: f32[64,512], index: 3, kind: output, shape index: {}]
  %s4 = sld [smem:[#allocation0]]
  $region53: #{_set_layer_pallas.1} parent=0
    _
  %s6 = ssub.s32 1, %s4
  %s7 = scalar_select 0, %s6, %s4
  $region1: #{_set_layer_pallas.1} parent=0
    #allocation2 [shape = 'u8[1048576]{0}', space=vmem, size = 0x100000, scoped, tag = 'input window, operand 1']
    #allocation3 [shape = 's32[2]{0}', space=sflag, size = 0x8, scoped, tag = 'scoped memory for _set_layer_pallas.1']
    #allocation4 [shape = 's32[2]{0}', space=sflag, size = 0x8, scoped, tag = 'scoped memory for _set_layer_pallas.1']
    #allocation5 [shape = 'u8[131072]{0}', space=vmem, size = 0x20000, scoped, tag = 'output window, operand 0']
    %8 = vsyncpa [#allocation3], 0
    %s9 = scalar_lea.sflag [#allocation3], 1
    %10 = vsyncpa %s9, 0
    %11 = vsyncpa [#allocation4], 0
    %s12 = scalar_lea.sflag [#allocation4], 1
    %13 = vsyncpa %s12, 0
    loop: start=0, step=1, limit=4
    $region2: #{_set_layer_pallas.1} parent=1 // loop_pre_header
      _
    $region3: #{_set_layer_pallas.1} parent=1 // loop_header
      %s15 = sphi 0, %s19
      %p16 = scmp.ge.s32.totalorder %s15, 4
      %s22 = sphi 0, %s41
      %s23 = sphi 0, %s37
      %s24 = sphi 0, %s33
      %s25 = sphi 0, %s22
      %s26 = sphi 0, %s23
      %s27 = sphi 0, %s24
      %s28 = sphi 0, %s25
      %s29 = sphi 0, %s26
      %s30 = sphi 0, %s27
      %s46 = sphi 0, %s48
      %s49 = sphi 0, %s46
      %s50 = sphi 0, %s49
      %s66 = sphi 0, %s50
      %s74 = sphi 0, %s76
      %s77 = sphi 0, %s74
      %s78 = sphi 0, %s77
      %s94 = sphi 0, %s78
      %s100 = sphi 0, %s102
      %s103 = sphi 0, %s100
      %s104 = sphi 0, %s103
      %s120 = sphi 0, %s104
      %s128 = sphi 0, %s130
      %s131 = sphi 0, %s128
      %s132 = sphi 0, %s131
      %s148 = sphi 0, %s132
    $region4: #{_set_layer_pallas.1} parent=1 // loop_header_branch
      %18 = sbr.rel (%p16) target = $region8
    $region5: #{_set_layer_pallas.1} parent=1 // loop_body
      %s20 = ssub.s32 %s15, 1
      %s21 = ssub.s32 %s15, 2
      %s31 = sadd.s32 1, %s24
      %p32 = scmp.ge.s32.totalorder %s31, 1
      %s33 = scalar_select %p32, 0, %s31
      %s34 = sadd.s32 1, %s23
      %s35 = scalar_select %p32, %s34, %s23
      %p36 = scmp.ge.s32.totalorder %s35, 2
      %s37 = scalar_select %p36, 0, %s35
      %s38 = sadd.s32 1, %s22
      %s39 = scalar_select %p36, %s38, %s22
      %p40 = scmp.ge.s32.totalorder %s39, 1
      %s41 = scalar_select %p40, 0, %s39
      %s42 = ssub.s32 %s22, %s41
      %s43 = ssub.s32 %s24, %s33
      %s44 = sor.u32 %s42, %s43
      %p45 = scmp.eq.s32.totalorder %s44, 0
      %s47 = sadd.s32 %s46, 1
      %s48 = scalar_select %p45, %s46, %s47
      %p51 = pneg %p45
      %p52 = scmp.eq.s32.totalorder %s15, 1
      %p53 = por %p51, %p52
      %p54 = scmp.ne.s32.totalorder %s46, %s49
      %p55 = scmp.eq.s32.totalorder %s15, 0
      %p56 = por %p54, %p55
      %p57 = scmp.ne.s32.totalorder %s46, %s49
      %p58 = scmp.eq.s32.totalorder %s20, 1
      %p59 = por %p57, %p58
      %p60 = scmp.ne.s32.totalorder %s49, %s50
      %p61 = scmp.eq.s32.totalorder %s20, 0
      %p62 = por %p60, %p61
      %p63 = scmp.ne.s32.totalorder %s49, %s50
      %p64 = scmp.eq.s32.totalorder %s21, 1
      %p65 = por %p63, %p64
      %p67 = scmp.ne.s32.totalorder %s50, %s66
      %p68 = scmp.eq.s32.totalorder %s21, 0
      %p69 = por %p67, %p68
      %s70 = ssub.s32 %s24, %s33
      %s71 = ssub.s32 %s23, %s37
      %s72 = sor.u32 %s70, %s71
      %p73 = scmp.eq.s32.totalorder %s72, 0
      %s75 = sadd.s32 %s74, 1
      %s76 = scalar_select %p73, %s74, %s75
      %p79 = pneg %p73
      %p80 = scmp.eq.s32.totalorder %s15, 1
      %p81 = por %p79, %p80
      %p82 = scmp.ne.s32.totalorder %s74, %s77
      %p83 = scmp.eq.s32.totalorder %s15, 0
      %p84 = por %p82, %p83
      %p85 = scmp.ne.s32.totalorder %s74, %s77
      %p86 = scmp.eq.s32.totalorder %s20, 1
      %p87 = por %p85, %p86
      %p88 = scmp.ne.s32.totalorder %s77, %s78
      %p89 = scmp.eq.s32.totalorder %s20, 0
      %p90 = por %p88, %p89
      %p91 = scmp.ne.s32.totalorder %s77, %s78
      %p92 = scmp.eq.s32.totalorder %s21, 1
      %p93 = por %p91, %p92
      %p95 = scmp.ne.s32.totalorder %s78, %s94
      %p96 = scmp.eq.s32.totalorder %s21, 0
      %p97 = por %p95, %p96
      %s98 = ssub.s32 %s23, %s37
      %p99 = scmp.eq.s32.totalorder %s98, 0
      %s101 = sadd.s32 %s100, 1
      %s102 = scalar_select %p99, %s100, %s101
      %p105 = pneg %p99
      %p106 = scmp.eq.s32.totalorder %s15, 1
      %p107 = por %p105, %p106
      %p108 = scmp.ne.s32.totalorder %s100, %s103
      %p109 = scmp.eq.s32.totalorder %s15, 0
      %p110 = por %p108, %p109
      %p111 = scmp.ne.s32.totalorder %s100, %s103
      %p112 = scmp.eq.s32.totalorder %s20, 1
      %p113 = por %p111, %p112
      %p114 = scmp.ne.s32.totalorder %s103, %s104
      %p115 = scmp.eq.s32.totalorder %s20, 0
      %p116 = por %p114, %p115
      %p117 = scmp.ne.s32.totalorder %s103, %s104
      %p118 = scmp.eq.s32.totalorder %s21, 1
      %p119 = por %p117, %p118
      %p121 = scmp.ne.s32.totalorder %s104, %s120
      %p122 = scmp.eq.s32.totalorder %s21, 0
      %p123 = por %p121, %p122
      %s124 = ssub.s32 %s22, %s41
      %s125 = ssub.s32 %s23, %s37
      %s126 = sor.u32 %s124, %s125
      %p127 = scmp.eq.s32.totalorder %s126, 0
      %s129 = sadd.s32 %s128, 1
      %s130 = scalar_select %p127, %s128, %s129
      %p133 = pneg %p127
      %p134 = scmp.eq.s32.totalorder %s15, 1
      %p135 = por %p133, %p134
      %p136 = scmp.ne.s32.totalorder %s128, %s131
      %p137 = scmp.eq.s32.totalorder %s15, 0
      %p138 = por %p136, %p137
      %p139 = scmp.ne.s32.totalorder %s128, %s131
      %p140 = scmp.eq.s32.totalorder %s20, 1
      %p141 = por %p139, %p140
      %p142 = scmp.ne.s32.totalorder %s131, %s132
      %p143 = scmp.eq.s32.totalorder %s20, 0
      %p144 = por %p142, %p143
      %p145 = scmp.ne.s32.totalorder %s131, %s132
      %p146 = scmp.eq.s32.totalorder %s21, 1
      %p147 = por %p145, %p146
      %p149 = scmp.ne.s32.totalorder %s132, %s148
      %p150 = scmp.eq.s32.totalorder %s21, 0
      %p151 = por %p149, %p150
      %p152 = scmp.le.s32.totalorder 1, %s15
      %p153 = scmp.lt.s32.totalorder %s15, 3
      %p154 = pnand %p152, %p153
      %p155 = pneg %p154
      // Predicated region
      $region9: #{_set_layer_pallas.1} parent=5 // pred_check
        _
      $region10: #{_set_layer_pallas.1} parent=5 // pred_check_branch
        %157 = sbr.rel (%p154) target = $region12
      $region11: #{_set_layer_pallas.1} parent=5 // pred_region
        %s158 = ssub.s32 %s15, 1
        // Predicated region
        $region13: #{_set_layer_pallas.1} parent=11 // pred_check
          %p159 = pneg %p62
        $region14: #{_set_layer_pallas.1} parent=11 // pred_check_branch
          %161 = sbr.rel (%p159) target = $region16
        $region15: #{_set_layer_pallas.1} parent=11 // pred_region
          %s162 = smul.u32 8, %s25
          %s163 = smul.u32 8, %s27
          %p164 = scmp.lt.s32.totalorder %s162, 7
          %s165 = scalar_select %p164, %s162, 7
          %p166 = scmp.lt.s32.totalorder %s163, 7
          %s167 = scalar_select %p166, %s163, 7
          %s168 = smul.addr %s165, 8
          %s169 = sadd.s32 %s167, %s168
          %s170 = smul.addr %s169, 4
          %s171 = scalar_lea.vmem %s0, %s170
          %s172 = smul.u32 8, %s25
          %s173 = smul.u32 8, %s27
        $region16: #{_set_layer_pallas.1} parent=11 // pred_fallthru
          _
      $region12: #{_set_layer_pallas.1} parent=5 // pred_fallthru
        _
      %p174 = scmp.lt.s32.totalorder %s15, 2
      // Predicated region
      $region17: #{_set_layer_pallas.1} parent=5 // pred_check
        %p175 = pneg %p174
      $region18: #{_set_layer_pallas.1} parent=5 // pred_check_branch
        %177 = sbr.rel (%p175) target = $region20
      $region19: #{_set_layer_pallas.1} parent=5 // pred_region
        // Predicated region
        $region21: #{_set_layer_pallas.1} parent=19 // pred_check
          %p178 = pneg %p84
        $region22: #{_set_layer_pallas.1} parent=19 // pred_check_branch
          %180 = sbr.rel (%p178) target = $region24
        $region23: #{_set_layer_pallas.1} parent=19 // pred_region
          %s181 = sand.u32 %s74, 1
          %s182 = scalar_lea.sflag [#allocation3], %s181
          %s183 = sand.u32 %s74, 1
          %s184 = smul.addr %s183, 1024
          %s185 = scalar_lea.vmem [#allocation2], %s184
          %s186 = smul.u32 128, %s24
          %s187 = smul.u32 2, %s23
          %s189 = ssub.s32 16384, 16384
          %190 = vsyncadd %s182, %s189
          %s191 = smul.addr %s186, 4
          %s192 = sadd.s32 %s187, %s191
          %s193 = smul.addr %s192, 64
          %s194 = scalar_lea.hbm %s1, %s193
          %s195 = sshll.u32 %s185, 4
          %s196 = int_to_ptr.vmem [resolvable:$true] %s195
          %201 = dma.hbm_to_vmem [thread:$0]  %s194, 16384, %s196, %s182, 256, 128, 8
        $region24: #{_set_layer_pallas.1} parent=19 // pred_fallthru
          _
        // Predicated region
        $region25: #{_set_layer_pallas.1} parent=19 // pred_check
          %p202 = pneg %p110
        $region26: #{_set_layer_pallas.1} parent=19 // pred_check_branch
          %204 = sbr.rel (%p202) target = $region28
        $region27: #{_set_layer_pallas.1} parent=19 // pred_region
          %s205 = smul.u32 2, %s23
          %p206 = scmp.lt.s32.totalorder %s205, 3
          %s207 = scalar_select %p206, %s205, 3
          %s208 = scalar_lea.vmem %s2, %s207
          %s209 = smul.u32 2, %s23
        $region28: #{_set_layer_pallas.1} parent=19 // pred_fallthru
          _
      $region20: #{_set_layer_pallas.1} parent=5 // pred_fallthru
        _
      %p210 = scmp.le.s32.totalorder 1, %s15
      %p211 = scmp.lt.s32.totalorder %s15, 3
      %p212 = pnand %p210, %p211
      %p213 = pneg %p212
      // Predicated region
      $region29: #{_set_layer_pallas.1} parent=5 // pred_check
        _
      $region30: #{_set_layer_pallas.1} parent=5 // pred_check_branch
        %215 = sbr.rel (%p212) target = $region32
      $region31: #{_set_layer_pallas.1} parent=5 // pred_region
        %s216 = ssub.s32 %s15, 1
        %s217 = sand.u32 %s77, 1
        %s218 = scalar_lea.sflag [#allocation3], %s217
        %s219 = sand.u32 %s77, 1
        %s220 = smul.addr %s219, 1024
        %s221 = scalar_lea.vmem [#allocation2], %s220
        // Predicated region
        $region33: #{_set_layer_pallas.1} parent=31 // pred_check
          %p222 = pneg %p90
        $region34: #{_set_layer_pallas.1} parent=31 // pred_check_branch
          %224 = sbr.rel (%p222) target = $region36
        $region35: #{_set_layer_pallas.1} parent=31 // pred_region
          %225 = dma.done %s218, 16384
        $region36: #{_set_layer_pallas.1} parent=31 // pred_fallthru
          _
        %s226 = smul.u32 8, %s25
        %s227 = smul.u32 8, %s27
        %p228 = scmp.lt.s32.totalorder %s226, 7
        %s229 = scalar_select %p228, %s226, 7
        %p230 = scmp.lt.s32.totalorder %s227, 7
        %s231 = scalar_select %p230, %s227, 7
        %s232 = smul.addr %s229, 8
        %s233 = sadd.s32 %s231, %s232
        %s234 = smul.addr %s233, 4
        %s235 = scalar_lea.vmem %s0, %s234
        %p236 = pneg %p62
        %p237 = pneg %p59
        %s238 = sand.u32 %s77, 1
        %s239 = scalar_lea.sflag [#allocation3], %s238
        %s240 = sand.u32 %s77, 1
        %s241 = smul.addr %s240, 1024
        %s242 = scalar_lea.vmem [#allocation2], %s241
        %p243 = pneg %p90
        %p244 = pneg %p87
        %s245 = smul.u32 2, %s26
        %p246 = scmp.lt.s32.totalorder %s245, 3
        %s247 = scalar_select %p246, %s245, 3
        %s248 = scalar_lea.vmem %s2, %s247
        %p249 = pneg %p116
        %p250 = pneg %p113
        %p251 = pneg %p144
        %p252 = pneg %p141
        %s253 = sand.u32 %s131, 1
        %s254 = scalar_lea.sflag [#allocation4], %s253
        %s255 = sand.u32 %s131, 1
        %s256 = smul.addr %s255, 128
        %s257 = scalar_lea.vmem [#allocation5], %s256
        %s258 = smul.u32 8, %s25
        %s259 = smul.u32 8, %s27
        %p260 = scmp.lt.s32.totalorder %s258, 7
        %s261 = scalar_select %p260, %s258, 7
        %p262 = scmp.lt.s32.totalorder %s259, 7
        %s263 = scalar_select %p262, %s259, 7
        %s264 = smul.addr %s261, 8
        %s265 = sadd.s32 %s263, %s264
        %s266 = smul.addr %s265, 4
        %s267 = scalar_lea.vmem %s0, %s266
        %s268 = smul.u32 8, %s25
        %s269 = smul.u32 8, %s27
        %s270 = smul.u32 128, %s27
        %s271 = smul.u32 2, %s26
        %s272 = smul.u32 2, %s26
        %p273 = scmp.lt.s32.totalorder %s272, 3
        %s274 = scalar_select %p273, %s272, 3
        %s275 = scalar_lea.vmem %s2, %s274
        %s276 = smul.u32 2, %s26
        %s277 = smul.u32 8, %s25
        %s278 = smul.u32 2, %s26
        %p279 = scmp.eq.s32.totalorder %s27, 0
        // Predicated region
        $region37: #{_set_layer_pallas.1} parent=31 // pred_check
          %p280 = pneg %p279
        $region38: #{_set_layer_pallas.1} parent=31 // pred_check_branch
          %282 = sbr.rel (%p280) target = $region40
        $region39: #{_set_layer_pallas.1} parent=31 // pred_region
          %v283 = vld [vmem:[%s275] sm:$0x3]
          %v285 = vlaneseq
          %v286 = vshrl.u32 %v285, 7
          %v287 = vsub.s32 0, %v286
          %v288 = vrot.slane %v283, %v287
          %v289 = vlaneseq
          %v290 = vshrl.u32 %v289, 7
          %v291 = vsub.s32 1, %v290
          %v292 = vrot.slane %v283, %v291
          %v295 = vadd.f32 %v288, 0.0
          %v296 = vadd.f32 %v292, 0.0
          %297 = vst [vmem:[%s257] sm:$0xff] %v295
          %298 = vst [vmem:[%s257 + $0x8] sm:$0xff] %v296
          %299 = vst [vmem:[%s257 + $0x10] sm:$0xff] %v295
          %300 = vst [vmem:[%s257 + $0x18] sm:$0xff] %v296
          %301 = vst [vmem:[%s257 + $0x20] sm:$0xff] %v295
          %302 = vst [vmem:[%s257 + $0x28] sm:$0xff] %v296
          %303 = vst [vmem:[%s257 + $0x30] sm:$0xff] %v295
          %304 = vst [vmem:[%s257 + $0x38] sm:$0xff] %v296
          %305 = vst [vmem:[%s257 + $0x40] sm:$0xff] %v295
          %306 = vst [vmem:[%s257 + $0x48] sm:$0xff] %v296
          %307 = vst [vmem:[%s257 + $0x50] sm:$0xff] %v295
          %308 = vst [vmem:[%s257 + $0x58] sm:$0xff] %v296
          %309 = vst [vmem:[%s257 + $0x60] sm:$0xff] %v295
          %310 = vst [vmem:[%s257 + $0x68] sm:$0xff] %v296
          %311 = vst [vmem:[%s257 + $0x70] sm:$0xff] %v295
          %312 = vst [vmem:[%s257 + $0x78] sm:$0xff] %v296
        $region40: #{_set_layer_pallas.1} parent=31 // pred_fallthru
          _
        %v313 = vld [vmem:[%s257] sm:$0xff]
        %v314 = vld [vmem:[%s257 + $0x8] sm:$0xff]
        %v315 = vld [vmem:[%s257 + $0x10] sm:$0xff]
        %v316 = vld [vmem:[%s257 + $0x18] sm:$0xff]
        %v317 = vld [vmem:[%s257 + $0x20] sm:$0xff]
        %v318 = vld [vmem:[%s257 + $0x28] sm:$0xff]
        %v319 = vld [vmem:[%s257 + $0x30] sm:$0xff]
        %v320 = vld [vmem:[%s257 + $0x38] sm:$0xff]
        %v321 = vld [vmem:[%s257 + $0x40] sm:$0xff]
        %v322 = vld [vmem:[%s257 + $0x48] sm:$0xff]
        %v323 = vld [vmem:[%s257 + $0x50] sm:$0xff]
        %v324 = vld [vmem:[%s257 + $0x58] sm:$0xff]
        %v325 = vld [vmem:[%s257 + $0x60] sm:$0xff]
        %v326 = vld [vmem:[%s257 + $0x68] sm:$0xff]
        %v327 = vld [vmem:[%s257 + $0x70] sm:$0xff]
        %v328 = vld [vmem:[%s257 + $0x78] sm:$0xff]
        %v329 = vld [vmem:[%s267] sm:$0xff]
        %v330 = vld [vmem:[%s267 + $0x8] sm:$0xff]
        %v331 = vld [vmem:[%s267 + $0x10] sm:$0xff]
        %v332 = vld [vmem:[%s267 + $0x18] sm:$0xff]
        %v333 = vld [vmem:[%s267 + $0x20] sm:$0xff]
        %v334 = vld [vmem:[%s267 + $0x28] sm:$0xff]
        %v335 = vld [vmem:[%s267 + $0x30] sm:$0xff]
        %v336 = vld [vmem:[%s267 + $0x38] sm:$0xff]
        %v337 = vld [vmem:[%s267 + $0x40] sm:$0xff]
        %v338 = vld [vmem:[%s267 + $0x48] sm:$0xff]
        %v339 = vld [vmem:[%s267 + $0x50] sm:$0xff]
        %v340 = vld [vmem:[%s267 + $0x58] sm:$0xff]
        %v341 = vld [vmem:[%s267 + $0x60] sm:$0xff]
        %v342 = vld [vmem:[%s267 + $0x68] sm:$0xff]
        %v343 = vld [vmem:[%s267 + $0x70] sm:$0xff]
        %v344 = vld [vmem:[%s267 + $0x78] sm:$0xff]
        %v345 = vld [vmem:[%s267 + $0x80] sm:$0xff]
        %v346 = vld [vmem:[%s267 + $0x88] sm:$0xff]
        %v347 = vld [vmem:[%s267 + $0x90] sm:$0xff]
        %v348 = vld [vmem:[%s267 + $0x98] sm:$0xff]
        %v349 = vld [vmem:[%s267 + $0xa0] sm:$0xff]
        %v350 = vld [vmem:[%s267 + $0xa8] sm:$0xff]
        %v351 = vld [vmem:[%s267 + $0xb0] sm:$0xff]
        %v352 = vld [vmem:[%s267 + $0xb8] sm:$0xff]
        %v353 = vld [vmem:[%s267 + $0xc0] sm:$0xff]
        %v354 = vld [vmem:[%s267 + $0xc8] sm:$0xff]
        %v355 = vld [vmem:[%s267 + $0xd0] sm:$0xff]
        %v356 = vld [vmem:[%s267 + $0xd8] sm:$0xff]
        %v357 = vld [vmem:[%s267 + $0xe0] sm:$0xff]
        %v358 = vld [vmem:[%s267 + $0xe8] sm:$0xff]
        %v359 = vld [vmem:[%s267 + $0xf0] sm:$0xff]
        %v360 = vld [vmem:[%s267 + $0xf8] sm:$0xff]
        %v361 = vld [vmem:[%s221] sm:$0xff]
        %v362 = vld [vmem:[%s221 + $0x8] sm:$0xff]
        %v363 = vld [vmem:[%s221 + $0x10] sm:$0xff]
        %v364 = vld [vmem:[%s221 + $0x18] sm:$0xff]
        %v365 = vld [vmem:[%s221 + $0x20] sm:$0xff]
        %v366 = vld [vmem:[%s221 + $0x28] sm:$0xff]
        %v367 = vld [vmem:[%s221 + $0x30] sm:$0xff]
        %v368 = vld [vmem:[%s221 + $0x38] sm:$0xff]
        %v369 = vld [vmem:[%s221 + $0x40] sm:$0xff]
        %v370 = vld [vmem:[%s221 + $0x48] sm:$0xff]
        %v371 = vld [vmem:[%s221 + $0x50] sm:$0xff]
        %v372 = vld [vmem:[%s221 + $0x58] sm:$0xff]
        %v373 = vld [vmem:[%s221 + $0x60] sm:$0xff]
        %v374 = vld [vmem:[%s221 + $0x68] sm:$0xff]
        %v375 = vld [vmem:[%s221 + $0x70] sm:$0xff]
        %v376 = vld [vmem:[%s221 + $0x78] sm:$0xff]
        %v377 = vld [vmem:[%s221 + $0x80] sm:$0xff]
        %v378 = vld [vmem:[%s221 + $0x88] sm:$0xff]
        %v379 = vld [vmem:[%s221 + $0x90] sm:$0xff]
        %v380 = vld [vmem:[%s221 + $0x98] sm:$0xff]
        %v381 = vld [vmem:[%s221 + $0xa0] sm:$0xff]
        %v382 = vld [vmem:[%s221 + $0xa8] sm:$0xff]
        %v383 = vld [vmem:[%s221 + $0xb0] sm:$0xff]
        %v384 = vld [vmem:[%s221 + $0xb8] sm:$0xff]
        %v385 = vld [vmem:[%s221 + $0xc0] sm:$0xff]
        %v386 = vld [vmem:[%s221 + $0xc8] sm:$0xff]
        %v387 = vld [vmem:[%s221 + $0xd0] sm:$0xff]
        %v388 = vld [vmem:[%s221 + $0xd8] sm:$0xff]
        %v389 = vld [vmem:[%s221 + $0xe0] sm:$0xff]
        %v390 = vld [vmem:[%s221 + $0xe8] sm:$0xff]
        %v391 = vld [vmem:[%s221 + $0xf0] sm:$0xff]
        %v392 = vld [vmem:[%s221 + $0xf8] sm:$0xff]
        %v393 = vld [vmem:[%s221 + $0x100] sm:$0xff]
        %v394 = vld [vmem:[%s221 + $0x108] sm:$0xff]
        %v395 = vld [vmem:[%s221 + $0x110] sm:$0xff]
        %v396 = vld [vmem:[%s221 + $0x118] sm:$0xff]
        %v397 = vld [vmem:[%s221 + $0x120] sm:$0xff]
        %v398 = vld [vmem:[%s221 + $0x128] sm:$0xff]
        %v399 = vld [vmem:[%s221 + $0x130] sm:$0xff]
        %v400 = vld [vmem:[%s221 + $0x138] sm:$0xff]
        %v401 = vld [vmem:[%s221 + $0x140] sm:$0xff]
        %v402 = vld [vmem:[%s221 + $0x148] sm:$0xff]
        %v403 = vld [vmem:[%s221 + $0x150] sm:$0xff]
        %v404 = vld [vmem:[%s221 + $0x158] sm:$0xff]
        %v405 = vld [vmem:[%s221 + $0x160] sm:$0xff]
        %v406 = vld [vmem:[%s221 + $0x168] sm:$0xff]
        %v407 = vld [vmem:[%s221 + $0x170] sm:$0xff]
        %v408 = vld [vmem:[%s221 + $0x178] sm:$0xff]
        %v409 = vld [vmem:[%s221 + $0x180] sm:$0xff]
        %v410 = vld [vmem:[%s221 + $0x188] sm:$0xff]
        %v411 = vld [vmem:[%s221 + $0x190] sm:$0xff]
        %v412 = vld [vmem:[%s221 + $0x198] sm:$0xff]
        %v413 = vld [vmem:[%s221 + $0x1a0] sm:$0xff]
        %v414 = vld [vmem:[%s221 + $0x1a8] sm:$0xff]
        %v415 = vld [vmem:[%s221 + $0x1b0] sm:$0xff]
        %v416 = vld [vmem:[%s221 + $0x1b8] sm:$0xff]
        %v417 = vld [vmem:[%s221 + $0x1c0] sm:$0xff]
        %v418 = vld [vmem:[%s221 + $0x1c8] sm:$0xff]
        %v419 = vld [vmem:[%s221 + $0x1d0] sm:$0xff]
        %v420 = vld [vmem:[%s221 + $0x1d8] sm:$0xff]
        %v421 = vld [vmem:[%s221 + $0x1e0] sm:$0xff]
        %v422 = vld [vmem:[%s221 + $0x1e8] sm:$0xff]
        %v423 = vld [vmem:[%s221 + $0x1f0] sm:$0xff]
        %v424 = vld [vmem:[%s221 + $0x1f8] sm:$0xff]
        %v425 = vld [vmem:[%s221 + $0x200] sm:$0xff]
        %v426 = vld [vmem:[%s221 + $0x208] sm:$0xff]
        %v427 = vld [vmem:[%s221 + $0x210] sm:$0xff]
        %v428 = vld [vmem:[%s221 + $0x218] sm:$0xff]
        %v429 = vld [vmem:[%s221 + $0x220] sm:$0xff]
        %v430 = vld [vmem:[%s221 + $0x228] sm:$0xff]
        %v431 = vld [vmem:[%s221 + $0x230] sm:$0xff]
        %v432 = vld [vmem:[%s221 + $0x238] sm:$0xff]
        %v433 = vld [vmem:[%s221 + $0x240] sm:$0xff]
        %v434 = vld [vmem:[%s221 + $0x248] sm:$0xff]
        %v435 = vld [vmem:[%s221 + $0x250] sm:$0xff]
        %v436 = vld [vmem:[%s221 + $0x258] sm:$0xff]
        %v437 = vld [vmem:[%s221 + $0x260] sm:$0xff]
        %v438 = vld [vmem:[%s221 + $0x268] sm:$0xff]
        %v439 = vld [vmem:[%s221 + $0x270] sm:$0xff]
        %v440 = vld [vmem:[%s221 + $0x278] sm:$0xff]
        %v441 = vld [vmem:[%s221 + $0x280] sm:$0xff]
        %v442 = vld [vmem:[%s221 + $0x288] sm:$0xff]
        %v443 = vld [vmem:[%s221 + $0x290] sm:$0xff]
        %v444 = vld [vmem:[%s221 + $0x298] sm:$0xff]
        %v445 = vld [vmem:[%s221 + $0x2a0] sm:$0xff]
        %v446 = vld [vmem:[%s221 + $0x2a8] sm:$0xff]
        %v447 = vld [vmem:[%s221 + $0x2b0] sm:$0xff]
        %v448 = vld [vmem:[%s221 + $0x2b8] sm:$0xff]
        %v449 = vld [vmem:[%s221 + $0x2c0] sm:$0xff]
        %v450 = vld [vmem:[%s221 + $0x2c8] sm:$0xff]
        %v451 = vld [vmem:[%s221 + $0x2d0] sm:$0xff]
        %v452 = vld [vmem:[%s221 + $0x2d8] sm:$0xff]
        %v453 = vld [vmem:[%s221 + $0x2e0] sm:$0xff]
        %v454 = vld [vmem:[%s221 + $0x2e8] sm:$0xff]
        %v455 = vld [vmem:[%s221 + $0x2f0] sm:$0xff]
        %v456 = vld [vmem:[%s221 + $0x2f8] sm:$0xff]
        %v457 = vld [vmem:[%s221 + $0x300] sm:$0xff]
        %v458 = vld [vmem:[%s221 + $0x308] sm:$0xff]
        %v459 = vld [vmem:[%s221 + $0x310] sm:$0xff]
        %v460 = vld [vmem:[%s221 + $0x318] sm:$0xff]
        %v461 = vld [vmem:[%s221 + $0x320] sm:$0xff]
        %v462 = vld [vmem:[%s221 + $0x328] sm:$0xff]
        %v463 = vld [vmem:[%s221 + $0x330] sm:$0xff]
        %v464 = vld [vmem:[%s221 + $0x338] sm:$0xff]
        %v465 = vld [vmem:[%s221 + $0x340] sm:$0xff]
        %v466 = vld [vmem:[%s221 + $0x348] sm:$0xff]
        %v467 = vld [vmem:[%s221 + $0x350] sm:$0xff]
        %v468 = vld [vmem:[%s221 + $0x358] sm:$0xff]
        %v469 = vld [vmem:[%s221 + $0x360] sm:$0xff]
        %v470 = vld [vmem:[%s221 + $0x368] sm:$0xff]
        %v471 = vld [vmem:[%s221 + $0x370] sm:$0xff]
        %v472 = vld [vmem:[%s221 + $0x378] sm:$0xff]
        %v473 = vld [vmem:[%s221 + $0x380] sm:$0xff]
        %v474 = vld [vmem:[%s221 + $0x388] sm:$0xff]
        %v475 = vld [vmem:[%s221 + $0x390] sm:$0xff]
        %v476 = vld [vmem:[%s221 + $0x398] sm:$0xff]
        %v477 = vld [vmem:[%s221 + $0x3a0] sm:$0xff]
        %v478 = vld [vmem:[%s221 + $0x3a8] sm:$0xff]
        %v479 = vld [vmem:[%s221 + $0x3b0] sm:$0xff]
        %v480 = vld [vmem:[%s221 + $0x3b8] sm:$0xff]
        %v481 = vld [vmem:[%s221 + $0x3c0] sm:$0xff]
        %v482 = vld [vmem:[%s221 + $0x3c8] sm:$0xff]
        %v483 = vld [vmem:[%s221 + $0x3d0] sm:$0xff]
        %v484 = vld [vmem:[%s221 + $0x3d8] sm:$0xff]
        %v485 = vld [vmem:[%s221 + $0x3e0] sm:$0xff]
        %v486 = vld [vmem:[%s221 + $0x3e8] sm:$0xff]
        %v487 = vld [vmem:[%s221 + $0x3f0] sm:$0xff]
        %v488 = vld [vmem:[%s221 + $0x3f8] sm:$0xff]
        %v521 = vunpack.c.l.b16 %v329
        %v522 = vunpack.c.h.b16 %v329
        %v523 = vunpack.c.l.b16 %v330
        %v524 = vunpack.c.h.b16 %v330
        %v525 = vunpack.c.l.b16 %v331
        %v526 = vunpack.c.h.b16 %v331
        %v527 = vunpack.c.l.b16 %v332
        %v528 = vunpack.c.h.b16 %v332
        %v529 = vunpack.c.l.b16 %v333
        %v530 = vunpack.c.h.b16 %v333
        %v531 = vunpack.c.l.b16 %v334
        %v532 = vunpack.c.h.b16 %v334
        %v533 = vunpack.c.l.b16 %v335
        %v534 = vunpack.c.h.b16 %v335
        %v535 = vunpack.c.l.b16 %v336
        %v536 = vunpack.c.h.b16 %v336
        %v537 = vunpack.c.l.b16 %v337
        %v538 = vunpack.c.h.b16 %v337
        %v539 = vunpack.c.l.b16 %v338
        %v540 = vunpack.c.h.b16 %v338
        %v541 = vunpack.c.l.b16 %v339
        %v542 = vunpack.c.h.b16 %v339
        %v543 = vunpack.c.l.b16 %v340
        %v544 = vunpack.c.h.b16 %v340
        %v545 = vunpack.c.l.b16 %v341
        %v546 = vunpack.c.h.b16 %v341
        %v547 = vunpack.c.l.b16 %v342
        %v548 = vunpack.c.h.b16 %v342
        %v549 = vunpack.c.l.b16 %v343
        %v550 = vunpack.c.h.b16 %v343
        %v551 = vunpack.c.l.b16 %v344
        %v552 = vunpack.c.h.b16 %v344
        %v553 = vunpack.c.l.b16 %v345
        %v554 = vunpack.c.h.b16 %v345
        %v555 = vunpack.c.l.b16 %v346
        %v556 = vunpack.c.h.b16 %v346
        %v557 = vunpack.c.l.b16 %v347
        %v558 = vunpack.c.h.b16 %v347
        %v559 = vunpack.c.l.b16 %v348
        %v560 = vunpack.c.h.b16 %v348
        %v561 = vunpack.c.l.b16 %v349
        %v562 = vunpack.c.h.b16 %v349
        %v563 = vunpack.c.l.b16 %v350
        %v564 = vunpack.c.h.b16 %v350
        %v565 = vunpack.c.l.b16 %v351
        %v566 = vunpack.c.h.b16 %v351
        %v567 = vunpack.c.l.b16 %v352
        %v568 = vunpack.c.h.b16 %v352
        %v569 = vunpack.c.l.b16 %v353
        %v570 = vunpack.c.h.b16 %v353
        %v571 = vunpack.c.l.b16 %v354
        %v572 = vunpack.c.h.b16 %v354
        %v573 = vunpack.c.l.b16 %v355
        %v574 = vunpack.c.h.b16 %v355
        %v575 = vunpack.c.l.b16 %v356
        %v576 = vunpack.c.h.b16 %v356
        %v577 = vunpack.c.l.b16 %v357
        %v578 = vunpack.c.h.b16 %v357
        %v579 = vunpack.c.l.b16 %v358
        %v580 = vunpack.c.h.b16 %v358
        %v581 = vunpack.c.l.b16 %v359
        %v582 = vunpack.c.h.b16 %v359
        %v583 = vunpack.c.l.b16 %v360
        %v584 = vunpack.c.h.b16 %v360
        %v585 = vpack.c.b16 %v529, %v521
        %v586 = vpack.c.b16 %v530, %v522
        %v587 = vpack.c.b16 %v531, %v523
        %v588 = vpack.c.b16 %v532, %v524
        %v589 = vpack.c.b16 %v533, %v525
        %v590 = vpack.c.b16 %v534, %v526
        %v591 = vpack.c.b16 %v535, %v527
        %v592 = vpack.c.b16 %v536, %v528
        %v593 = vpack.c.b16 %v545, %v537
        %v594 = vpack.c.b16 %v546, %v538
        %v595 = vpack.c.b16 %v547, %v539
        %v596 = vpack.c.b16 %v548, %v540
        %v597 = vpack.c.b16 %v549, %v541
        %v598 = vpack.c.b16 %v550, %v542
        %v599 = vpack.c.b16 %v551, %v543
        %v600 = vpack.c.b16 %v552, %v544
        %v601 = vpack.c.b16 %v561, %v553
        %v602 = vpack.c.b16 %v562, %v554
        %v603 = vpack.c.b16 %v563, %v555
        %v604 = vpack.c.b16 %v564, %v556
        %v605 = vpack.c.b16 %v565, %v557
        %v606 = vpack.c.b16 %v566, %v558
        %v607 = vpack.c.b16 %v567, %v559
        %v608 = vpack.c.b16 %v568, %v560
        %v609 = vpack.c.b16 %v577, %v569
        %v610 = vpack.c.b16 %v578, %v570
        %v611 = vpack.c.b16 %v579, %v571
        %v612 = vpack.c.b16 %v580, %v572
        %v613 = vpack.c.b16 %v581, %v573
        %v614 = vpack.c.b16 %v582, %v574
        %v615 = vpack.c.b16 %v583, %v575
        %v616 = vpack.c.b16 %v584, %v576
        %v777 = vunpack.c.l.b16 %v361
        %v778 = vunpack.c.h.b16 %v361
        %v779 = vunpack.c.l.b16 %v362
        %v780 = vunpack.c.h.b16 %v362
        %v781 = vunpack.c.l.b16 %v363
        %v782 = vunpack.c.h.b16 %v363
        %v783 = vunpack.c.l.b16 %v364
        %v784 = vunpack.c.h.b16 %v364
        %v785 = vunpack.c.l.b16 %v365
        %v786 = vunpack.c.h.b16 %v365
        %v787 = vunpack.c.l.b16 %v366
        %v788 = vunpack.c.h.b16 %v366
        %v789 = vunpack.c.l.b16 %v367
        %v790 = vunpack.c.h.b16 %v367
        %v791 = vunpack.c.l.b16 %v368
        %v792 = vunpack.c.h.b16 %v368
        %v793 = vunpack.c.l.b16 %v369
        %v794 = vunpack.c.h.b16 %v369
        %v795 = vunpack.c.l.b16 %v370
        %v796 = vunpack.c.h.b16 %v370
        %v797 = vunpack.c.l.b16 %v371
        %v798 = vunpack.c.h.b16 %v371
        %v799 = vunpack.c.l.b16 %v372
        %v800 = vunpack.c.h.b16 %v372
        %v801 = vunpack.c.l.b16 %v373
        %v802 = vunpack.c.h.b16 %v373
        %v803 = vunpack.c.l.b16 %v374
        %v804 = vunpack.c.h.b16 %v374
        %v805 = vunpack.c.l.b16 %v375
        %v806 = vunpack.c.h.b16 %v375
        %v807 = vunpack.c.l.b16 %v376
        %v808 = vunpack.c.h.b16 %v376
        %v809 = vunpack.c.l.b16 %v377
        %v810 = vunpack.c.h.b16 %v377
        %v811 = vunpack.c.l.b16 %v378
        %v812 = vunpack.c.h.b16 %v378
        %v813 = vunpack.c.l.b16 %v379
        %v814 = vunpack.c.h.b16 %v379
        %v815 = vunpack.c.l.b16 %v380
        %v816 = vunpack.c.h.b16 %v380
        %v817 = vunpack.c.l.b16 %v381
        %v818 = vunpack.c.h.b16 %v381
        %v819 = vunpack.c.l.b16 %v382
        %v820 = vunpack.c.h.b16 %v382
        %v821 = vunpack.c.l.b16 %v383
        %v822 = vunpack.c.h.b16 %v383
        %v823 = vunpack.c.l.b16 %v384
        %v824 = vunpack.c.h.b16 %v384
        %v825 = vunpack.c.l.b16 %v385
        %v826 = vunpack.c.h.b16 %v385
        %v827 = vunpack.c.l.b16 %v386
        %v828 = vunpack.c.h.b16 %v386
        %v829 = vunpack.c.l.b16 %v387
        %v830 = vunpack.c.h.b16 %v387
        %v831 = vunpack.c.l.b16 %v388
        %v832 = vunpack.c.h.b16 %v388
        %v833 = vunpack.c.l.b16 %v389
        %v834 = vunpack.c.h.b16 %v389
        %v835 = vunpack.c.l.b16 %v390
        %v836 = vunpack.c.h.b16 %v390
        %v837 = vunpack.c.l.b16 %v391
        %v838 = vunpack.c.h.b16 %v391
        %v839 = vunpack.c.l.b16 %v392
        %v840 = vunpack.c.h.b16 %v392
        %v841 = vunpack.c.l.b16 %v393
        %v842 = vunpack.c.h.b16 %v393
        %v843 = vunpack.c.l.b16 %v394
        %v844 = vunpack.c.h.b16 %v394
        %v845 = vunpack.c.l.b16 %v395
        %v846 = vunpack.c.h.b16 %v395
        %v847 = vunpack.c.l.b16 %v396
        %v848 = vunpack.c.h.b16 %v396
        %v849 = vunpack.c.l.b16 %v397
        %v850 = vunpack.c.h.b16 %v397
        %v851 = vunpack.c.l.b16 %v398
        %v852 = vunpack.c.h.b16 %v398
        %v853 = vunpack.c.l.b16 %v399
        %v854 = vunpack.c.h.b16 %v399
        %v855 = vunpack.c.l.b16 %v400
        %v856 = vunpack.c.h.b16 %v400
        %v857 = vunpack.c.l.b16 %v401
        %v858 = vunpack.c.h.b16 %v401
        %v859 = vunpack.c.l.b16 %v402
        %v860 = vunpack.c.h.b16 %v402
        %v861 = vunpack.c.l.b16 %v403
        %v862 = vunpack.c.h.b16 %v403
        %v863 = vunpack.c.l.b16 %v404
        %v864 = vunpack.c.h.b16 %v404
        %v865 = vunpack.c.l.b16 %v405
        %v866 = vunpack.c.h.b16 %v405
        %v867 = vunpack.c.l.b16 %v406
        %v868 = vunpack.c.h.b16 %v406
        %v869 = vunpack.c.l.b16 %v407
        %v870 = vunpack.c.h.b16 %v407
        %v871 = vunpack.c.l.b16 %v408
        %v872 = vunpack.c.h.b16 %v408
        %v873 = vunpack.c.l.b16 %v409
        %v874 = vunpack.c.h.b16 %v409
        %v875 = vunpack.c.l.b16 %v410
        %v876 = vunpack.c.h.b16 %v410
        %v877 = vunpack.c.l.b16 %v411
        %v878 = vunpack.c.h.b16 %v411
        %v879 = vunpack.c.l.b16 %v412
        %v880 = vunpack.c.h.b16 %v412
        %v881 = vunpack.c.l.b16 %v413
        %v882 = vunpack.c.h.b16 %v413
        %v883 = vunpack.c.l.b16 %v414
        %v884 = vunpack.c.h.b16 %v414
        %v885 = vunpack.c.l.b16 %v415
        %v886 = vunpack.c.h.b16 %v415
        %v887 = vunpack.c.l.b16 %v416
        %v888 = vunpack.c.h.b16 %v416
        %v889 = vunpack.c.l.b16 %v417
        %v890 = vunpack.c.h.b16 %v417
        %v891 = vunpack.c.l.b16 %v418
        %v892 = vunpack.c.h.b16 %v418
        %v893 = vunpack.c.l.b16 %v419
        %v894 = vunpack.c.h.b16 %v419
        %v895 = vunpack.c.l.b16 %v420
        %v896 = vunpack.c.h.b16 %v420
        %v897 = vunpack.c.l.b16 %v421
        %v898 = vunpack.c.h.b16 %v421
        %v899 = vunpack.c.l.b16 %v422
        %v900 = vunpack.c.h.b16 %v422
        %v901 = vunpack.c.l.b16 %v423
        %v902 = vunpack.c.h.b16 %v423
        %v903 = vunpack.c.l.b16 %v424
        %v904 = vunpack.c.h.b16 %v424
        %v905 = vunpack.c.l.b16 %v425
        %v906 = vunpack.c.h.b16 %v425
        %v907 = vunpack.c.l.b16 %v426
        %v908 = vunpack.c.h.b16 %v426
        %v909 = vunpack.c.l.b16 %v427
        %v910 = vunpack.c.h.b16 %v427
        %v911 = vunpack.c.l.b16 %v428
        %v912 = vunpack.c.h.b16 %v428
        %v913 = vunpack.c.l.b16 %v429
        %v914 = vunpack.c.h.b16 %v429
        %v915 = vunpack.c.l.b16 %v430
        %v916 = vunpack.c.h.b16 %v430
        %v917 = vunpack.c.l.b16 %v431
        %v918 = vunpack.c.h.b16 %v431
        %v919 = vunpack.c.l.b16 %v432
        %v920 = vunpack.c.h.b16 %v432
        %v921 = vunpack.c.l.b16 %v433
        %v922 = vunpack.c.h.b16 %v433
        %v923 = vunpack.c.l.b16 %v434
        %v924 = vunpack.c.h.b16 %v434
        %v925 = vunpack.c.l.b16 %v435
        %v926 = vunpack.c.h.b16 %v435
        %v927 = vunpack.c.l.b16 %v436
        %v928 = vunpack.c.h.b16 %v436
        %v929 = vunpack.c.l.b16 %v437
        %v930 = vunpack.c.h.b16 %v437
        %v931 = vunpack.c.l.b16 %v438
        %v932 = vunpack.c.h.b16 %v438
        %v933 = vunpack.c.l.b16 %v439
        %v934 = vunpack.c.h.b16 %v439
        %v935 = vunpack.c.l.b16 %v440
        %v936 = vunpack.c.h.b16 %v440
        %v937 = vunpack.c.l.b16 %v441
        %v938 = vunpack.c.h.b16 %v441
        %v939 = vunpack.c.l.b16 %v442
        %v940 = vunpack.c.h.b16 %v442
        %v941 = vunpack.c.l.b16 %v443
        %v942 = vunpack.c.h.b16 %v443
        %v943 = vunpack.c.l.b16 %v444
        %v944 = vunpack.c.h.b16 %v444
        %v945 = vunpack.c.l.b16 %v445
        %v946 = vunpack.c.h.b16 %v445
        %v947 = vunpack.c.l.b16 %v446
        %v948 = vunpack.c.h.b16 %v446
        %v949 = vunpack.c.l.b16 %v447
        %v950 = vunpack.c.h.b16 %v447
        %v951 = vunpack.c.l.b16 %v448
        %v952 = vunpack.c.h.b16 %v448
        %v953 = vunpack.c.l.b16 %v449
        %v954 = vunpack.c.h.b16 %v449
        %v955 = vunpack.c.l.b16 %v450
        %v956 = vunpack.c.h.b16 %v450
        %v957 = vunpack.c.l.b16 %v451
        %v958 = vunpack.c.h.b16 %v451
        %v959 = vunpack.c.l.b16 %v452
        %v960 = vunpack.c.h.b16 %v452
        %v961 = vunpack.c.l.b16 %v453
        %v962 = vunpack.c.h.b16 %v453
        %v963 = vunpack.c.l.b16 %v454
        %v964 = vunpack.c.h.b16 %v454
        %v965 = vunpack.c.l.b16 %v455
        %v966 = vunpack.c.h.b16 %v455
        %v967 = vunpack.c.l.b16 %v456
        %v968 = vunpack.c.h.b16 %v456
        %v969 = vunpack.c.l.b16 %v457
        %v970 = vunpack.c.h.b16 %v457
        %v971 = vunpack.c.l.b16 %v458
        %v972 = vunpack.c.h.b16 %v458
        %v973 = vunpack.c.l.b16 %v459
        %v974 = vunpack.c.h.b16 %v459
        %v975 = vunpack.c.l.b16 %v460
        %v976 = vunpack.c.h.b16 %v460
        %v977 = vunpack.c.l.b16 %v461
        %v978 = vunpack.c.h.b16 %v461
        %v979 = vunpack.c.l.b16 %v462
        %v980 = vunpack.c.h.b16 %v462
        %v981 = vunpack.c.l.b16 %v463
        %v982 = vunpack.c.h.b16 %v463
        %v983 = vunpack.c.l.b16 %v464
        %v984 = vunpack.c.h.b16 %v464
        %v985 = vunpack.c.l.b16 %v465
        %v986 = vunpack.c.h.b16 %v465
        %v987 = vunpack.c.l.b16 %v466
        %v988 = vunpack.c.h.b16 %v466
        %v989 = vunpack.c.l.b16 %v467
        %v990 = vunpack.c.h.b16 %v467
        %v991 = vunpack.c.l.b16 %v468
        %v992 = vunpack.c.h.b16 %v468
        %v993 = vunpack.c.l.b16 %v469
        %v994 = vunpack.c.h.b16 %v469
        %v995 = vunpack.c.l.b16 %v470
        %v996 = vunpack.c.h.b16 %v470
        %v997 = vunpack.c.l.b16 %v471
        %v998 = vunpack.c.h.b16 %v471
        %v999 = vunpack.c.l.b16 %v472
        %v1000 = vunpack.c.h.b16 %v472
        %v1001 = vunpack.c.l.b16 %v473
        %v1002 = vunpack.c.h.b16 %v473
        %v1003 = vunpack.c.l.b16 %v474
        %v1004 = vunpack.c.h.b16 %v474
        %v1005 = vunpack.c.l.b16 %v475
        %v1006 = vunpack.c.h.b16 %v475
        %v1007 = vunpack.c.l.b16 %v476
        %v1008 = vunpack.c.h.b16 %v476
        %v1009 = vunpack.c.l.b16 %v477
        %v1010 = vunpack.c.h.b16 %v477
        %v1011 = vunpack.c.l.b16 %v478
        %v1012 = vunpack.c.h.b16 %v478
        %v1013 = vunpack.c.l.b16 %v479
        %v1014 = vunpack.c.h.b16 %v479
        %v1015 = vunpack.c.l.b16 %v480
        %v1016 = vunpack.c.h.b16 %v480
        %v1017 = vunpack.c.l.b16 %v481
        %v1018 = vunpack.c.h.b16 %v481
        %v1019 = vunpack.c.l.b16 %v482
        %v1020 = vunpack.c.h.b16 %v482
        %v1021 = vunpack.c.l.b16 %v483
        %v1022 = vunpack.c.h.b16 %v483
        %v1023 = vunpack.c.l.b16 %v484
        %v1024 = vunpack.c.h.b16 %v484
        %v1025 = vunpack.c.l.b16 %v485
        %v1026 = vunpack.c.h.b16 %v485
        %v1027 = vunpack.c.l.b16 %v486
        %v1028 = vunpack.c.h.b16 %v486
        %v1029 = vunpack.c.l.b16 %v487
        %v1030 = vunpack.c.h.b16 %v487
        %v1031 = vunpack.c.l.b16 %v488
        %v1032 = vunpack.c.h.b16 %v488
        %v1033 = vpack.c.b16 %v779, %v777
        %v1034 = vpack.c.b16 %v780, %v778
        %v1035 = vpack.c.b16 %v783, %v781
        %v1036 = vpack.c.b16 %v784, %v782
        %v1037 = vpack.c.b16 %v787, %v785
        %v1038 = vpack.c.b16 %v788, %v786
        %v1039 = vpack.c.b16 %v791, %v789
        %v1040 = vpack.c.b16 %v792, %v790
        %v1041 = vpack.c.b16 %v795, %v793
        %v1042 = vpack.c.b16 %v796, %v794
        %v1043 = vpack.c.b16 %v799, %v797
        %v1044 = vpack.c.b16 %v800, %v798
        %v1045 = vpack.c.b16 %v803, %v801
        %v1046 = vpack.c.b16 %v804, %v802
        %v1047 = vpack.c.b16 %v807, %v805
        %v1048 = vpack.c.b16 %v808, %v806
        %v1049 = vpack.c.b16 %v811, %v809
        %v1050 = vpack.c.b16 %v812, %v810
        %v1051 = vpack.c.b16 %v815, %v813
        %v1052 = vpack.c.b16 %v816, %v814
        %v1053 = vpack.c.b16 %v819, %v817
        %v1054 = vpack.c.b16 %v820, %v818
        %v1055 = vpack.c.b16 %v823, %v821
        %v1056 = vpack.c.b16 %v824, %v822
        %v1057 = vpack.c.b16 %v827, %v825
        %v1058 = vpack.c.b16 %v828, %v826
        %v1059 = vpack.c.b16 %v831, %v829
        %v1060 = vpack.c.b16 %v832, %v830
        %v1061 = vpack.c.b16 %v835, %v833
        %v1062 = vpack.c.b16 %v836, %v834
        %v1063 = vpack.c.b16 %v839, %v837
        %v1064 = vpack.c.b16 %v840, %v838
        %v1065 = vpack.c.b16 %v843, %v841
        %v1066 = vpack.c.b16 %v844, %v842
        %v1067 = vpack.c.b16 %v847, %v845
        %v1068 = vpack.c.b16 %v848, %v846
        %v1069 = vpack.c.b16 %v851, %v849
        %v1070 = vpack.c.b16 %v852, %v850
        %v1071 = vpack.c.b16 %v855, %v853
        %v1072 = vpack.c.b16 %v856, %v854
        %v1073 = vpack.c.b16 %v859, %v857
        %v1074 = vpack.c.b16 %v860, %v858
        %v1075 = vpack.c.b16 %v863, %v861
        %v1076 = vpack.c.b16 %v864, %v862
        %v1077 = vpack.c.b16 %v867, %v865
        %v1078 = vpack.c.b16 %v868, %v866
        %v1079 = vpack.c.b16 %v871, %v869
        %v1080 = vpack.c.b16 %v872, %v870
        %v1081 = vpack.c.b16 %v875, %v873
        %v1082 = vpack.c.b16 %v876, %v874
        %v1083 = vpack.c.b16 %v879, %v877
        %v1084 = vpack.c.b16 %v880, %v878
        %v1085 = vpack.c.b16 %v883, %v881
        %v1086 = vpack.c.b16 %v884, %v882
        %v1087 = vpack.c.b16 %v887, %v885
        %v1088 = vpack.c.b16 %v888, %v886
        %v1089 = vpack.c.b16 %v891, %v889
        %v1090 = vpack.c.b16 %v892, %v890
        %v1091 = vpack.c.b16 %v895, %v893
        %v1092 = vpack.c.b16 %v896, %v894
        %v1093 = vpack.c.b16 %v899, %v897
        %v1094 = vpack.c.b16 %v900, %v898
        %v1095 = vpack.c.b16 %v903, %v901
        %v1096 = vpack.c.b16 %v904, %v902
        %v1097 = vpack.c.b16 %v907, %v905
        %v1098 = vpack.c.b16 %v908, %v906
        %v1099 = vpack.c.b16 %v911, %v909
        %v1100 = vpack.c.b16 %v912, %v910
        %v1101 = vpack.c.b16 %v915, %v913
        %v1102 = vpack.c.b16 %v916, %v914
        %v1103 = vpack.c.b16 %v919, %v917
        %v1104 = vpack.c.b16 %v920, %v918
        %v1105 = vpack.c.b16 %v923, %v921
        %v1106 = vpack.c.b16 %v924, %v922
        %v1107 = vpack.c.b16 %v927, %v925
        %v1108 = vpack.c.b16 %v928, %v926
        %v1109 = vpack.c.b16 %v931, %v929
        %v1110 = vpack.c.b16 %v932, %v930
        %v1111 = vpack.c.b16 %v935, %v933
        %v1112 = vpack.c.b16 %v936, %v934
        %v1113 = vpack.c.b16 %v939, %v937
        %v1114 = vpack.c.b16 %v940, %v938
        %v1115 = vpack.c.b16 %v943, %v941
        %v1116 = vpack.c.b16 %v944, %v942
        %v1117 = vpack.c.b16 %v947, %v945
        %v1118 = vpack.c.b16 %v948, %v946
        %v1119 = vpack.c.b16 %v951, %v949
        %v1120 = vpack.c.b16 %v952, %v950
        %v1121 = vpack.c.b16 %v955, %v953
        %v1122 = vpack.c.b16 %v956, %v954
        %v1123 = vpack.c.b16 %v959, %v957
        %v1124 = vpack.c.b16 %v960, %v958
        %v1125 = vpack.c.b16 %v963, %v961
        %v1126 = vpack.c.b16 %v964, %v962
        %v1127 = vpack.c.b16 %v967, %v965
        %v1128 = vpack.c.b16 %v968, %v966
        %v1129 = vpack.c.b16 %v971, %v969
        %v1130 = vpack.c.b16 %v972, %v970
        %v1131 = vpack.c.b16 %v975, %v973
        %v1132 = vpack.c.b16 %v976, %v974
        %v1133 = vpack.c.b16 %v979, %v977
        %v1134 = vpack.c.b16 %v980, %v978
        %v1135 = vpack.c.b16 %v983, %v981
        %v1136 = vpack.c.b16 %v984, %v982
        %v1137 = vpack.c.b16 %v987, %v985
        %v1138 = vpack.c.b16 %v988, %v986
        %v1139 = vpack.c.b16 %v991, %v989
        %v1140 = vpack.c.b16 %v992, %v990
        %v1141 = vpack.c.b16 %v995, %v993
        %v1142 = vpack.c.b16 %v996, %v994
        %v1143 = vpack.c.b16 %v999, %v997
        %v1144 = vpack.c.b16 %v1000, %v998
        %v1145 = vpack.c.b16 %v1003, %v1001
        %v1146 = vpack.c.b16 %v1004, %v1002
        %v1147 = vpack.c.b16 %v1007, %v1005
        %v1148 = vpack.c.b16 %v1008, %v1006
        %v1149 = vpack.c.b16 %v1011, %v1009
        %v1150 = vpack.c.b16 %v1012, %v1010
        %v1151 = vpack.c.b16 %v1015, %v1013
        %v1152 = vpack.c.b16 %v1016, %v1014
        %v1153 = vpack.c.b16 %v1019, %v1017
        %v1154 = vpack.c.b16 %v1020, %v1018
        %v1155 = vpack.c.b16 %v1023, %v1021
        %v1156 = vpack.c.b16 %v1024, %v1022
        %v1157 = vpack.c.b16 %v1027, %v1025
        %v1158 = vpack.c.b16 %v1028, %v1026
        %v1159 = vpack.c.b16 %v1031, %v1029
        %v1160 = vpack.c.b16 %v1032, %v1030
        %1289 = vmatprep.subr.bf16.mxu0 %v1034
        %1290 = vmatpush1.bf16.msra.mxu0 %v1033
        %1291 = vmatprep.subr.bf16.mxu0 %v1036
        %1292 = vmatpush1.bf16.msra.mxu0 %v1035
        %1293 = vmatprep.subr.bf16.mxu0 %v1038
        %1294 = vmatpush1.bf16.msra.mxu0 %v1037
        %1295 = vmatprep.subr.bf16.mxu0 %v1040
        %1296 = vmatpush1.bf16.msra.mxu0 %v1039
        %1297 = vmatprep.subr.bf16.mxu0 %v1042
        %1298 = vmatpush1.bf16.msra.mxu0 %v1041
        %1299 = vmatprep.subr.bf16.mxu0 %v1044
        %1300 = vmatpush1.bf16.msra.mxu0 %v1043
        %1301 = vmatprep.subr.bf16.mxu0 %v1046
        %1302 = vmatpush1.bf16.msra.mxu0 %v1045
        %1303 = vmatprep.subr.bf16.mxu0 %v1048
        %1304 = vmatpush1.bf16.msra.mxu0 %v1047
        %1305 = vmatprep.subr.bf16.mxu0 %v1050
        %1306 = vmatpush1.bf16.msra.mxu0 %v1049
        %1307 = vmatprep.subr.bf16.mxu0 %v1052
        %1308 = vmatpush1.bf16.msra.mxu0 %v1051
        %1309 = vmatprep.subr.bf16.mxu0 %v1054
        %1310 = vmatpush1.bf16.msra.mxu0 %v1053
        %1311 = vmatprep.subr.bf16.mxu0 %v1056
        %1312 = vmatpush1.bf16.msra.mxu0 %v1055
        %1313 = vmatprep.subr.bf16.mxu0 %v1058
        %1314 = vmatpush1.bf16.msra.mxu0 %v1057
        %1315 = vmatprep.subr.bf16.mxu0 %v1060
        %1316 = vmatpush1.bf16.msra.mxu0 %v1059
        %1317 = vmatprep.subr.bf16.mxu0 %v1062
        %1318 = vmatpush1.bf16.msra.mxu0 %v1061
        %1319 = vmatprep.subr.bf16.mxu0 %v1064
        %1320 = vmatpush1.bf16.msra.mxu0 %v1063
        %1321 = vmatprep.mubr.bf16.mxu0 %v586
        %1322 = vmatmul.mubr.bf16.gmra.mrb[0].mxu0 %v585
        %v1323 = vpop.f32.mrb[0].mxu0
        %v1324 = vadd.f32 0.0, %v1323
        %v1325 = vpop.f32.mrb[0].mxu0
        %v1326 = vadd.f32 0.0, %v1325
        %v1327 = vpop.f32.mrb[0].mxu0
        %v1328 = vadd.f32 0.0, %v1327
        %v1329 = vpop.f32.mrb[0].mxu0
        %v1330 = vadd.f32 0.0, %v1329
        %1331 = vmatprep.mubr.bf16.mxu0 %v594
        %1332 = vmatmul.mubr.bf16.gmra.mrb[0].mxu0 %v593
        %v1333 = vpop.f32.mrb[0].mxu0
        %v1334 = vadd.f32 0.0, %v1333
        %v1335 = vpop.f32.mrb[0].mxu0
        %v1336 = vadd.f32 0.0, %v1335
        %v1337 = vpop.f32.mrb[0].mxu0
        %v1338 = vadd.f32 0.0, %v1337
        %v1339 = vpop.f32.mrb[0].mxu0
        %v1340 = vadd.f32 0.0, %v1339
        %1341 = vmatprep.mubr.bf16.mxu0 %v602
        %1342 = vmatmul.mubr.bf16.gmra.mrb[0].mxu0 %v601
        %v1343 = vpop.f32.mrb[0].mxu0
        %v1344 = vadd.f32 0.0, %v1343
        %v1345 = vpop.f32.mrb[0].mxu0
        %v1346 = vadd.f32 0.0, %v1345
        %v1347 = vpop.f32.mrb[0].mxu0
        %v1348 = vadd.f32 0.0, %v1347
        %v1349 = vpop.f32.mrb[0].mxu0
        %v1350 = vadd.f32 0.0, %v1349
        %1351 = vmatprep.mubr.bf16.mxu0 %v610
        %1352 = vmatmul.mubr.bf16.gmra.mrb[0].mxu0 %v609
        %v1353 = vpop.f32.mrb[0].mxu0
        %v1354 = vadd.f32 0.0, %v1353
        %v1355 = vpop.f32.mrb[0].mxu0
        %v1356 = vadd.f32 0.0, %v1355
        %v1357 = vpop.f32.mrb[0].mxu0
        %v1358 = vadd.f32 0.0, %v1357
        %v1359 = vpop.f32.mrb[0].mxu0
        %v1360 = vadd.f32 0.0, %v1359
        %1361 = vdwg.mxu0
        %1362 = vmatprep.subr.bf16.mxu0 %v1066
        %1363 = vmatpush1.bf16.msra.mxu0 %v1065
        %1364 = vmatprep.subr.bf16.mxu0 %v1068
        %1365 = vmatpush1.bf16.msra.mxu0 %v1067
        %1366 = vmatprep.subr.bf16.mxu0 %v1070
        %1367 = vmatpush1.bf16.msra.mxu0 %v1069
        %1368 = vmatprep.subr.bf16.mxu0 %v1072
        %1369 = vmatpush1.bf16.msra.mxu0 %v1071
        %1370 = vmatprep.subr.bf16.mxu0 %v1074
        %1371 = vmatpush1.bf16.msra.mxu0 %v1073
        %1372 = vmatprep.subr.bf16.mxu0 %v1076
        %1373 = vmatpush1.bf16.msra.mxu0 %v1075
        %1374 = vmatprep.subr.bf16.mxu0 %v1078
        %1375 = vmatpush1.bf16.msra.mxu0 %v1077
        %1376 = vmatprep.subr.bf16.mxu0 %v1080
        %1377 = vmatpush1.bf16.msra.mxu0 %v1079
        %1378 = vmatprep.subr.bf16.mxu0 %v1082
        %1379 = vmatpush1.bf16.msra.mxu0 %v1081
        %1380 = vmatprep.subr.bf16.mxu0 %v1084
        %1381 = vmatpush1.bf16.msra.mxu0 %v1083
        %1382 = vmatprep.subr.bf16.mxu0 %v1086
        %1383 = vmatpush1.bf16.msra.mxu0 %v1085
        %1384 = vmatprep.subr.bf16.mxu0 %v1088
        %1385 = vmatpush1.bf16.msra.mxu0 %v1087
        %1386 = vmatprep.subr.bf16.mxu0 %v1090
        %1387 = vmatpush1.bf16.msra.mxu0 %v1089
        %1388 = vmatprep.subr.bf16.mxu0 %v1092
        %1389 = vmatpush1.bf16.msra.mxu0 %v1091
        %1390 = vmatprep.subr.bf16.mxu0 %v1094
        %1391 = vmatpush1.bf16.msra.mxu0 %v1093
        %1392 = vmatprep.subr.bf16.mxu0 %v1096
        %1393 = vmatpush1.bf16.msra.mxu0 %v1095
        %1394 = vmatprep.mubr.bf16.mxu0 %v588
        %1395 = vmatmul.mubr.bf16.gmra.mrb[0].mxu0 %v587
        %v1396 = vpop.f32.mrb[0].mxu0
        %v1397 = vadd.f32 %v1324, %v1396
        %v1398 = vpop.f32.mrb[0].mxu0
        %v1399 = vadd.f32 %v1326, %v1398
        %v1400 = vpop.f32.mrb[0].mxu0
        %v1401 = vadd.f32 %v1328, %v1400
        %v1402 = vpop.f32.mrb[0].mxu0
        %v1403 = vadd.f32 %v1330, %v1402
        %1404 = vmatprep.mubr.bf16.mxu0 %v596
        %1405 = vmatmul.mubr.bf16.gmra.mrb[0].mxu0 %v595
        %v1406 = vpop.f32.mrb[0].mxu0
        %v1407 = vadd.f32 %v1334, %v1406
        %v1408 = vpop.f32.mrb[0].mxu0
        %v1409 = vadd.f32 %v1336, %v1408
        %v1410 = vpop.f32.mrb[0].mxu0
        %v1411 = vadd.f32 %v1338, %v1410
        %v1412 = vpop.f32.mrb[0].mxu0
        %v1413 = vadd.f32 %v1340, %v1412
        %1414 = vmatprep.mubr.bf16.mxu0 %v604
        %1415 = vmatmul.mubr.bf16.gmra.mrb[0].mxu0 %v603
        %v1416 = vpop.f32.mrb[0].mxu0
        %v1417 = vadd.f32 %v1344, %v1416
        %v1418 = vpop.f32.mrb[0].mxu0
        %v1419 = vadd.f32 %v1346, %v1418
        %v1420 = vpop.f32.mrb[0].mxu0
        %v1421 = vadd.f32 %v1348, %v1420
        %v1422 = vpop.f32.mrb[0].mxu0
        %v1423 = vadd.f32 %v1350, %v1422
        %1424 = vmatprep.mubr.bf16.mxu0 %v612
        %1425 = vmatmul.mubr.bf16.gmra.mrb[0].mxu0 %v611
        %v1426 = vpop.f32.mrb[0].mxu0
        %v1427 = vadd.f32 %v1354, %v1426
        %v1428 = vpop.f32.mrb[0].mxu0
        %v1429 = vadd.f32 %v1356, %v1428
        %v1430 = vpop.f32.mrb[0].mxu0
        %v1431 = vadd.f32 %v1358, %v1430
        %v1432 = vpop.f32.mrb[0].mxu0
        %v1433 = vadd.f32 %v1360, %v1432
        %1434 = vdwg.mxu0
        %1435 = vmatprep.subr.bf16.mxu0 %v1098
        %1436 = vmatpush1.bf16.msra.mxu0 %v1097
        %1437 = vmatprep.subr.bf16.mxu0 %v1100
        %1438 = vmatpush1.bf16.msra.mxu0 %v1099
        %1439 = vmatprep.subr.bf16.mxu0 %v1102
        %1440 = vmatpush1.bf16.msra.mxu0 %v1101
        %1441 = vmatprep.subr.bf16.mxu0 %v1104
        %1442 = vmatpush1.bf16.msra.mxu0 %v1103
        %1443 = vmatprep.subr.bf16.mxu0 %v1106
        %1444 = vmatpush1.bf16.msra.mxu0 %v1105
        %1445 = vmatprep.subr.bf16.mxu0 %v1108
        %1446 = vmatpush1.bf16.msra.mxu0 %v1107
        %1447 = vmatprep.subr.bf16.mxu0 %v1110
        %1448 = vmatpush1.bf16.msra.mxu0 %v1109
        %1449 = vmatprep.subr.bf16.mxu0 %v1112
        %1450 = vmatpush1.bf16.msra.mxu0 %v1111
        %1451 = vmatprep.subr.bf16.mxu0 %v1114
        %1452 = vmatpush1.bf16.msra.mxu0 %v1113
        %1453 = vmatprep.subr.bf16.mxu0 %v1116
        %1454 = vmatpush1.bf16.msra.mxu0 %v1115
        %1455 = vmatprep.subr.bf16.mxu0 %v1118
        %1456 = vmatpush1.bf16.msra.mxu0 %v1117
        %1457 = vmatprep.subr.bf16.mxu0 %v1120
        %1458 = vmatpush1.bf16.msra.mxu0 %v1119
        %1459 = vmatprep.subr.bf16.mxu0 %v1122
        %1460 = vmatpush1.bf16.msra.mxu0 %v1121
        %1461 = vmatprep.subr.bf16.mxu0 %v1124
        %1462 = vmatpush1.bf16.msra.mxu0 %v1123
        %1463 = vmatprep.subr.bf16.mxu0 %v1126
        %1464 = vmatpush1.bf16.msra.mxu0 %v1125
        %1465 = vmatprep.subr.bf16.mxu0 %v1128
        %1466 = vmatpush1.bf16.msra.mxu0 %v1127
        %1467 = vmatprep.mubr.bf16.mxu0 %v590
        %1468 = vmatmul.mubr.bf16.gmra.mrb[0].mxu0 %v589
        %v1469 = vpop.f32.mrb[0].mxu0
        %v1470 = vadd.f32 %v1397, %v1469
        %v1471 = vpop.f32.mrb[0].mxu0
        %v1472 = vadd.f32 %v1399, %v1471
        %v1473 = vpop.f32.mrb[0].mxu0
        %v1474 = vadd.f32 %v1401, %v1473
        %v1475 = vpop.f32.mrb[0].mxu0
        %v1476 = vadd.f32 %v1403, %v1475
        %1477 = vmatprep.mubr.bf16.mxu0 %v598
        %1478 = vmatmul.mubr.bf16.gmra.mrb[0].mxu0 %v597
        %v1479 = vpop.f32.mrb[0].mxu0
        %v1480 = vadd.f32 %v1407, %v1479
        %v1481 = vpop.f32.mrb[0].mxu0
        %v1482 = vadd.f32 %v1409, %v1481
        %v1483 = vpop.f32.mrb[0].mxu0
        %v1484 = vadd.f32 %v1411, %v1483
        %v1485 = vpop.f32.mrb[0].mxu0
        %v1486 = vadd.f32 %v1413, %v1485
        %1487 = vmatprep.mubr.bf16.mxu0 %v606
        %1488 = vmatmul.mubr.bf16.gmra.mrb[0].mxu0 %v605
        %v1489 = vpop.f32.mrb[0].mxu0
        %v1490 = vadd.f32 %v1417, %v1489
        %v1491 = vpop.f32.mrb[0].mxu0
        %v1492 = vadd.f32 %v1419, %v1491
        %v1493 = vpop.f32.mrb[0].mxu0
        %v1494 = vadd.f32 %v1421, %v1493
        %v1495 = vpop.f32.mrb[0].mxu0
        %v1496 = vadd.f32 %v1423, %v1495
        %1497 = vmatprep.mubr.bf16.mxu0 %v614
        %1498 = vmatmul.mubr.bf16.gmra.mrb[0].mxu0 %v613
        %v1499 = vpop.f32.mrb[0].mxu0
        %v1500 = vadd.f32 %v1427, %v1499
        %v1501 = vpop.f32.mrb[0].mxu0
        %v1502 = vadd.f32 %v1429, %v1501
        %v1503 = vpop.f32.mrb[0].mxu0
        %v1504 = vadd.f32 %v1431, %v1503
        %v1505 = vpop.f32.mrb[0].mxu0
        %v1506 = vadd.f32 %v1433, %v1505
        %1507 = vdwg.mxu0
        %1508 = vmatprep.subr.bf16.mxu0 %v1130
        %1509 = vmatpush1.bf16.msra.mxu0 %v1129
        %1510 = vmatprep.subr.bf16.mxu0 %v1132
        %1511 = vmatpush1.bf16.msra.mxu0 %v1131
        %1512 = vmatprep.subr.bf16.mxu0 %v1134
        %1513 = vmatpush1.bf16.msra.mxu0 %v1133
        %1514 = vmatprep.subr.bf16.mxu0 %v1136
        %1515 = vmatpush1.bf16.msra.mxu0 %v1135
        %1516 = vmatprep.subr.bf16.mxu0 %v1138
        %1517 = vmatpush1.bf16.msra.mxu0 %v1137
        %1518 = vmatprep.subr.bf16.mxu0 %v1140
        %1519 = vmatpush1.bf16.msra.mxu0 %v1139
        %1520 = vmatprep.subr.bf16.mxu0 %v1142
        %1521 = vmatpush1.bf16.msra.mxu0 %v1141
        %1522 = vmatprep.subr.bf16.mxu0 %v1144
        %1523 = vmatpush1.bf16.msra.mxu0 %v1143
        %1524 = vmatprep.subr.bf16.mxu0 %v1146
        %1525 = vmatpush1.bf16.msra.mxu0 %v1145
        %1526 = vmatprep.subr.bf16.mxu0 %v1148
        %1527 = vmatpush1.bf16.msra.mxu0 %v1147
        %1528 = vmatprep.subr.bf16.mxu0 %v1150
        %1529 = vmatpush1.bf16.msra.mxu0 %v1149
        %1530 = vmatprep.subr.bf16.mxu0 %v1152
        %1531 = vmatpush1.bf16.msra.mxu0 %v1151
        %1532 = vmatprep.subr.bf16.mxu0 %v1154
        %1533 = vmatpush1.bf16.msra.mxu0 %v1153
        %1534 = vmatprep.subr.bf16.mxu0 %v1156
        %1535 = vmatpush1.bf16.msra.mxu0 %v1155
        %1536 = vmatprep.subr.bf16.mxu0 %v1158
        %1537 = vmatpush1.bf16.msra.mxu0 %v1157
        %1538 = vmatprep.subr.bf16.mxu0 %v1160
        %1539 = vmatpush1.bf16.msra.mxu0 %v1159
        %1540 = vmatprep.mubr.bf16.mxu0 %v592
        %1541 = vmatmul.mubr.bf16.gmra.mrb[0].mxu0 %v591
        %v1542 = vpop.f32.mrb[0].mxu0
        %v1543 = vadd.f32 %v1470, %v1542
        %v1544 = vpop.f32.mrb[0].mxu0
        %v1545 = vadd.f32 %v1472, %v1544
        %v1546 = vpop.f32.mrb[0].mxu0
        %v1547 = vadd.f32 %v1474, %v1546
        %v1548 = vpop.f32.mrb[0].mxu0
        %v1549 = vadd.f32 %v1476, %v1548
        %1550 = vmatprep.mubr.bf16.mxu0 %v600
        %1551 = vmatmul.mubr.bf16.gmra.mrb[0].mxu0 %v599
        %v1552 = vpop.f32.mrb[0].mxu0
        %v1553 = vadd.f32 %v1480, %v1552
        %v1554 = vpop.f32.mrb[0].mxu0
        %v1555 = vadd.f32 %v1482, %v1554
        %v1556 = vpop.f32.mrb[0].mxu0
        %v1557 = vadd.f32 %v1484, %v1556
        %v1558 = vpop.f32.mrb[0].mxu0
        %v1559 = vadd.f32 %v1486, %v1558
        %1560 = vmatprep.mubr.bf16.mxu0 %v608
        %1561 = vmatmul.mubr.bf16.gmra.mrb[0].mxu0 %v607
        %v1562 = vpop.f32.mrb[0].mxu0
        %v1563 = vadd.f32 %v1490, %v1562
        %v1564 = vpop.f32.mrb[0].mxu0
        %v1565 = vadd.f32 %v1492, %v1564
        %v1566 = vpop.f32.mrb[0].mxu0
        %v1567 = vadd.f32 %v1494, %v1566
        %v1568 = vpop.f32.mrb[0].mxu0
        %v1569 = vadd.f32 %v1496, %v1568
        %1570 = vmatprep.mubr.bf16.mxu0 %v616
        %1571 = vmatmul.mubr.bf16.gmra.mrb[0].mxu0 %v615
        %v1572 = vpop.f32.mrb[0].mxu0
        %v1573 = vadd.f32 %v1500, %v1572
        %v1574 = vpop.f32.mrb[0].mxu0
        %v1575 = vadd.f32 %v1502, %v1574
        %v1576 = vpop.f32.mrb[0].mxu0
        %v1577 = vadd.f32 %v1504, %v1576
        %v1578 = vpop.f32.mrb[0].mxu0
        %v1579 = vadd.f32 %v1506, %v1578
        %1580 = vdwg.mxu0
        %v1581 = vadd.f32 %v313, %v1543
        %v1582 = vadd.f32 %v314, %v1545
        %v1583 = vadd.f32 %v315, %v1547
        %v1584 = vadd.f32 %v316, %v1549
        %v1585 = vadd.f32 %v317, %v1553
        %v1586 = vadd.f32 %v318, %v1555
        %v1587 = vadd.f32 %v319, %v1557
        %v1588 = vadd.f32 %v320, %v1559
        %v1589 = vadd.f32 %v321, %v1563
        %v1590 = vadd.f32 %v322, %v1565
        %v1591 = vadd.f32 %v323, %v1567
        %v1592 = vadd.f32 %v324, %v1569
        %v1593 = vadd.f32 %v325, %v1573
        %v1594 = vadd.f32 %v326, %v1575
        %v1595 = vadd.f32 %v327, %v1577
        %v1596 = vadd.f32 %v328, %v1579
        %1597 = vst [vmem:[%s257] sm:$0xff] %v1581
        %1598 = vst [vmem:[%s257 + $0x8] sm:$0xff] %v1582
        %1599 = vst [vmem:[%s257 + $0x10] sm:$0xff] %v1583
        %1600 = vst [vmem:[%s257 + $0x18] sm:$0xff] %v1584
        %1601 = vst [vmem:[%s257 + $0x20] sm:$0xff] %v1585
        %1602 = vst [vmem:[%s257 + $0x28] sm:$0xff] %v1586
        %1603 = vst [vmem:[%s257 + $0x30] sm:$0xff] %v1587
        %1604 = vst [vmem:[%s257 + $0x38] sm:$0xff] %v1588
        %1605 = vst [vmem:[%s257 + $0x40] sm:$0xff] %v1589
        %1606 = vst [vmem:[%s257 + $0x48] sm:$0xff] %v1590
        %1607 = vst [vmem:[%s257 + $0x50] sm:$0xff] %v1591
        %1608 = vst [vmem:[%s257 + $0x58] sm:$0xff] %v1592
        %1609 = vst [vmem:[%s257 + $0x60] sm:$0xff] %v1593
        %1610 = vst [vmem:[%s257 + $0x68] sm:$0xff] %v1594
        %1611 = vst [vmem:[%s257 + $0x70] sm:$0xff] %v1595
        %1612 = vst [vmem:[%s257 + $0x78] sm:$0xff] %v1596
        %s1613 = sand.u32 %s131, 1
        %s1614 = scalar_lea.sflag [#allocation4], %s1613
        %s1615 = sand.u32 %s131, 1
        %s1616 = smul.addr %s1615, 128
        %s1617 = scalar_lea.vmem [#allocation5], %s1616
        // Predicated region
        $region41: #{_set_layer_pallas.1} parent=31 // pred_check
          %p1618 = pneg %p141
        $region42: #{_set_layer_pallas.1} parent=31 // pred_check_branch
          %1620 = sbr.rel (%p1618) target = $region44
        $region43: #{_set_layer_pallas.1} parent=31 // pred_region
          %s1621 = smul.u32 8, %s25
          %s1622 = smul.u32 2, %s26
          %s1624 = ssub.s32 2048, 2048
          %1625 = vsyncadd %s1614, %s1624
          %s1626 = smul.addr %s1621, 4
          %s1627 = sadd.s32 %s1622, %s1626
          %s1628 = smul.addr %s1627, 128
          %s1629 = scalar_lea.hbm %s3, %s1628
          %s1630 = sshll.u32 %s1617, 4
          %s1631 = int_to_ptr.vmem [resolvable:$true] %s1630
          %1636 = dma.vmem_to_hbm [thread:$0]  %s1631, 2048, %s1629, %s1614, 256, 512, 16
        $region44: #{_set_layer_pallas.1} parent=31 // pred_fallthru
          _
      $region32: #{_set_layer_pallas.1} parent=5 // pred_fallthru
        _
      %p1637 = scmp.le.s32.totalorder 2, %s15
      // Predicated region
      $region45: #{_set_layer_pallas.1} parent=5 // pred_check
        %p1638 = pneg %p1637
      $region46: #{_set_layer_pallas.1} parent=5 // pred_check_branch
        %1640 = sbr.rel (%p1638) target = $region48
      $region47: #{_set_layer_pallas.1} parent=5 // pred_region
        %s1641 = ssub.s32 %s15, 2
        // Predicated region
        $region49: #{_set_layer_pallas.1} parent=47 // pred_check
          %p1642 = pneg %p147
        $region50: #{_set_layer_pallas.1} parent=47 // pred_check_branch
          %1644 = sbr.rel (%p1642) target = $region52
        $region51: #{_set_layer_pallas.1} parent=47 // pred_region
          %s1645 = sand.u32 %s132, 1
          %s1646 = scalar_lea.sflag [#allocation4], %s1645
          %s1647 = sand.u32 %s132, 1
          %s1648 = smul.addr %s1647, 128
          %s1649 = scalar_lea.vmem [#allocation5], %s1648
          %1650 = dma.done %s1646, 2048
        $region52: #{_set_layer_pallas.1} parent=47 // pred_fallthru
          _
      $region48: #{_set_layer_pallas.1} parent=5 // pred_fallthru
        _
    $region6: #{_set_layer_pallas.1} parent=1 // loop_footer
      %s19 = sadd.s32 1, %s15
    $region7: #{_set_layer_pallas.1} parent=1 // loop_footer_branch
      %14 = sbr.rel target = $region3
    $region8: #{_set_layer_pallas.1} parent=1 // loop_exit
      _
    %1651 = vsyncpa [#allocation3], 1
    %s1652 = scalar_lea.sflag [#allocation3], 1
    %1653 = vsyncpa %s1652, 1
    %1654 = vsyncpa [#allocation4], 1
    %s1655 = scalar_lea.sflag [#allocation4], 1
    %1656 = vsyncpa %s1655, 1

</llo_original>
